<compile_context>
chip_gen: v5e
topology: v5e:2x2
jax: 0.10.0
libtpu: 0.0.40
codegen_flags: <defaults>
</compile_context>

<pallas_src>
import functools

import jax
import jax.numpy as jnp
from jax.experimental import pallas as pl
from jax.experimental.pallas import tpu as pltpu

_LANE = 128


def _round_up(x, m):
    return (x + m - 1) // m * m


# ---------------------------------------------------------------------------
# Kernel: fused 3-layer MLP on one batch tile (3 MXU matmuls + 2 ReLUs).
# ---------------------------------------------------------------------------
def _mlp_kernel(x_ref, w1_ref, w2_ref, w3_ref, bias_ref, o_ref):
    n_hidden = w1_ref.shape[1]
    n_half = w2_ref.shape[1]
    n_out = w3_ref.shape[1]

    # f32 -> bf16 MXU-operand cast happens here (hidden behind the pipeline)
    # instead of as a separate XLA pre-pass over x in HBM.
    x = x_ref[...].astype(jnp.bfloat16)                      # [bm, F] bf16

    # Single bias slab, one row per layer, lane offset 0 (cheap static slices).
    b1 = bias_ref[0:1, 0:n_hidden]                           # f32 [1, H]
    b2 = bias_ref[1:2, 0:n_half]                             # f32 [1, H/2]
    b3 = bias_ref[2:3, 0:n_out]                              # f32 [1, O]

    h1 = jnp.dot(x, w1_ref[...], preferred_element_type=jnp.float32)
    h1 = jnp.maximum(h1 + b1, 0.0).astype(jnp.bfloat16)      # bias + ReLU (f32)

    h2 = jnp.dot(h1, w2_ref[...], preferred_element_type=jnp.float32)
    h2 = jnp.maximum(h2 + b2, 0.0).astype(jnp.bfloat16)

    out = jnp.dot(h2, w3_ref[...], preferred_element_type=jnp.float32)
    o_ref[...] = (out + b3).astype(o_ref.dtype)


# ---------------------------------------------------------------------------
# Chip-aware static configuration (computed outside jit).
# ---------------------------------------------------------------------------
def _device_kind():
    try:
        return jax.devices()[0].device_kind.lower()
    except Exception:
        return ""


def _is_v7x(kind):
    return ("v7" in kind) or ("7x" in kind)


def _vmem_cap_bytes():
    try:
        cap = int(pltpu.get_tpu_info().vmem_capacity_bytes)
    except Exception:
        cap = 64 * 1024 * 1024            # conservative: v7x physical VMEM
    # Leave headroom for compiler-internal scratch / double buffers.
    return max(8 << 20, int(0.75 * cap))


def _pick_block_b(B):
    # Small batches: a single grid step (lowest fixed per-step overhead and a
    # full MXU M dimension -- the whole problem fits in a couple MiB of VMEM).
    if B <= 1024:
        return B
    # Large batches: aim for ~8+ steps so double-buffered x/out DMAs hide
    # behind compute; keep the tile a multiple of 256 rows, capped for VMEM.
    return min(2048, max(256, _round_up(pl.cdiv(B, 8), 256)))


# ---------------------------------------------------------------------------
# Jitted implementation (all shape/layout decisions are static arguments).
# ---------------------------------------------------------------------------
@functools.partial(
    jax.jit,
    static_argnames=("block_b", "pad_output", "core_parallel", "vmem_cap"))
def _mlp_forward_impl(x, w1, b1, w2, b2, w3, b3, *, block_b, pad_output,
                      core_parallel, vmem_cap):
    B, n_feature = x.shape
    n_hidden = w1.shape[1]
    n_half = w2.shape[1]
    n_output = w3.shape[1]

    n_out_eff = _round_up(n_output, _LANE) if pad_output else n_output

    # bf16 MXU operands for the (small, resident) weights; x is cast in-kernel.
    w1_bf = w1.astype(jnp.bfloat16)
    w2_bf = w2.astype(jnp.bfloat16)
    w3_bf = w3.astype(jnp.bfloat16)
    b3_f = b3.astype(jnp.float32)
    if n_out_eff != n_output:
        w3_bf = jnp.pad(w3_bf, ((0, 0), (0, n_out_eff - n_output)))
        b3_f = jnp.pad(b3_f, (0, n_out_eff - n_output))

    # One (3, bw) f32 bias slab: a single tiny DMA stream instead of three.
    bw = max(n_hidden, n_half, n_out_eff)
    bias = jnp.stack([
        jnp.pad(b1.astype(jnp.float32), (0, bw - n_hidden)),
        jnp.pad(b2.astype(jnp.float32), (0, bw - n_half)),
        jnp.pad(b3_f, (0, bw - n_out_eff)),
    ])

    bm = int(block_b)
    grid_steps = pl.cdiv(B, bm)           # partial last block handled by Pallas

    in_specs = [
        pl.BlockSpec((bm, n_feature), lambda i: (i, 0)),        # x: batch tiled
        pl.BlockSpec((n_feature, n_hidden), lambda i: (0, 0)),  # w1 (resident)
        pl.BlockSpec((n_hidden, n_half), lambda i: (0, 0)),     # w2 (resident)
        pl.BlockSpec((n_half, n_out_eff), lambda i: (0, 0)),    # w3 (resident)
        pl.BlockSpec((3, bw), lambda i: (0, 0)),                # bias slab
    ]
    out_specs = pl.BlockSpec((bm, n_out_eff), lambda i: (i, 0))

    # TODO(synk): add a K-tiled reduction-grid fallback (f32 accumulator
    # scratch + pl.when init/finalize) for configs whose resident bf16 weights
    # exceed ~1/4 of per-core VMEM (hits v7x's 64 MiB long before v5e/v6e).

    f32_b, bf16_b = 4, 2
    weight_bytes = (n_feature * n_hidden + n_hidden * n_half
                    + n_half * n_out_eff) * bf16_b
    bias_bytes = 3 * bw * f32_b
    vmem_need = (2 * bm * n_feature * f32_b              # x double-buffer (f32)
                 + 2 * bm * n_out_eff * f32_b            # out double-buffer
                 + 2 * (weight_bytes + bias_bytes)       # resident weights
                 + 4 * bm * max(n_hidden, n_half, n_out_eff) * f32_b)  # interm.
    vmem_limit = int(min(max(2 * vmem_need, 8 << 20), vmem_cap))

    flops = 2 * B * (n_feature * n_hidden + n_hidden * n_half
                     + n_half * n_out_eff)
    bytes_accessed = (x.size * x.dtype.itemsize
                      + weight_bytes + bias_bytes
                      + B * n_out_eff * x.dtype.itemsize)

    if core_parallel and grid_steps >= 2:
        dims = (pltpu.CORE_PARALLEL,)     # v7x: shard batch across both TCs
    else:
        dims = ("parallel",)

    out = pl.pallas_call(
        _mlp_kernel,
        out_shape=jax.ShapeDtypeStruct((B, n_out_eff), x.dtype),
        grid_spec=pl.GridSpec(grid=(grid_steps,), in_specs=in_specs,
                              out_specs=out_specs),
        compiler_params=pltpu.CompilerParams(
            dimension_semantics=dims,
            vmem_limit_bytes=vmem_limit,
        ),
        cost_estimate=pl.CostEstimate(
            flops=flops, transcendentals=0, bytes_accessed=bytes_accessed),
    )(x, w1_bf, w2_bf, w3_bf, bias)

    return out[:, :n_output] if n_out_eff != n_output else out


def mlp_forward(x, w1, b1, w2, b2, w3, b3, *, block_b=None, pad_output=None):
    """Fused MLP forward: x [B, n_feature] -> [B, n_output]."""
    kind = _device_kind()
    n_output = w3.shape[1]
    if pad_output is None:
        # Lane-dense (128-padded) stores only on v7x; on v5e/v6e the 8x HBM
        # write amplification costs more than the masked-store penalty.
        pad_output = _is_v7x(kind) and (n_output % _LANE != 0)
    if block_b is None:
        block_b = _pick_block_b(x.shape[0])
    return _mlp_forward_impl(
        x, w1, b1, w2, b2, w3, b3,
        block_b=int(block_b), pad_output=bool(pad_output),
        core_parallel=_is_v7x(kind), vmem_cap=_vmem_cap_bytes())


# ---------------------------------------------------------------------------
# Init + pure-JAX reference.
# ---------------------------------------------------------------------------
def _init_linear(key, fan_in, fan_out, dtype=jnp.float32):
    """Deterministic init mimicking torch.nn.Linear (kaiming-uniform-ish)."""
    kw, kb = jax.random.split(key)
    bound = 1.0 / jnp.sqrt(fan_in)
    # Stored as [in, out] so the kernel does x @ W.
    w = jax.random.uniform(kw, (fan_in, fan_out), dtype, -bound, bound)
    b = jax.random.uniform(kb, (fan_out,), dtype, -bound, bound)
    return w, b


def _mlp_ref(x, w1, b1, w2, b2, w3, b3, mxu_dtype=jnp.float32):
    """Pure-JAX reference; mxu_dtype=bf16 matches the kernel's operand casts."""
    def lin(a, w, b):
        return jnp.dot(a.astype(mxu_dtype), w.astype(mxu_dtype),
                       preferred_element_type=jnp.float32) + b
    h1 = jnp.maximum(lin(x, w1, b1), 0.0)
    h2 = jnp.maximum(lin(h1, w2, b2), 0.0)
    return lin(h2, w3, b3)


if __name__ == "__main__":
    # MLP(n_feature=32, n_hidden=64, n_output=16), batch 512.
    B, n_feature, n_hidden, n_output = 512, 32, 64, 16
    n_half = n_hidden // 2

    key = jax.random.PRNGKey(0)
    kx, k1, k2, k3 = jax.random.split(key, 4)

    x = jax.random.normal(kx, (B, n_feature), jnp.float32)
    w1, b1 = _init_linear(k1, n_feature, n_hidden)
    w2, b2 = _init_linear(k2, n_hidden, n_half)
    w3, b3 = _init_linear(k3, n_half, n_output)

    # Note: bf16 MXU operands with f32 accumulation is a deliberate (inference
    # grade) accuracy tradeoff vs the all-f32 PyTorch module.
    ref_bf16 = _mlp_ref(x, w1, b1, w2, b2, w3, b3, mxu_dtype=jnp.bfloat16)
    ref_f32 = _mlp_ref(x, w1, b1, w2, b2, w3, b3, mxu_dtype=jnp.float32)

    # Default path: adaptive single-step grid (B <= 1024), unpadded output.
    out = jax.block_until_ready(mlp_forward(x, w1, b1, w2, b2, w3, b3))
    assert out.shape == (B, n_output)
    assert jnp.allclose(out, ref_bf16, atol=1e-3, rtol=1e-3), \
        "mismatch vs bf16-matched JAX reference"
    assert jnp.allclose(out, ref_f32, atol=5e-2, rtol=5e-2), \
        "mismatch vs f32 JAX reference"

    # Multi-step grid with a ragged last block (no batch padding; Pallas masks
    # the partial tile -- rows are independent, so garbage rows never leak).
    xb = x[:300]
    out2 = jax.block_until_ready(
        mlp_forward(xb, w1, b1, w2, b2, w3, b3, block_b=128))
    assert out2.shape == (300, n_output)
    assert jnp.allclose(out2, ref_bf16[:300], atol=1e-3, rtol=1e-3), \
        "mismatch on ragged multi-step grid"

    # Lane-dense padded-output path (default on v7x), forced here for coverage.
    out3 = jax.block_until_ready(
        mlp_forward(x, w1, b1, w2, b2, w3, b3, block_b=128, pad_output=True))
    assert out3.shape == (B, n_output)
    assert jnp.allclose(out3, ref_bf16, atol=1e-3, rtol=1e-3), \
        "mismatch on padded-output path"

    print("KERNEL_OK")
</pallas_src>

<mosaic_0001>
module attributes {stable_mosaic.version = 11 : i64} {
  func.func @_mlp_kernel(%arg0: i32, %arg1: memref<512x32xf32, #tpu.memory_space<vmem>>, %arg2: memref<32x64xbf16, #tpu.memory_space<vmem>>, %arg3: memref<64x32xbf16, #tpu.memory_space<vmem>>, %arg4: memref<32x16xbf16, #tpu.memory_space<vmem>>, %arg5: memref<3x64xf32, #tpu.memory_space<vmem>>, %arg6: memref<512x16xf32, #tpu.memory_space<vmem>>) attributes {dimension_semantics = [#tpu.dimension_semantics<parallel>], iteration_bounds = array<i64: 1>, scalar_prefetch = 0 : i64, scratch_operands = 0 : i64, tpu.core_type = #tpu.core_type<tc>, window_params = [{transform_indices = @transform_0, window_bounds = array<i64: 512, 32>}, {pipeline_mode = #tpu.pipeline_mode<synchronous>, transform_indices = @transform_1, window_bounds = array<i64: 32, 64>}, {pipeline_mode = #tpu.pipeline_mode<synchronous>, transform_indices = @transform_2, window_bounds = array<i64: 64, 32>}, {pipeline_mode = #tpu.pipeline_mode<synchronous>, transform_indices = @transform_3, window_bounds = array<i64: 32, 16>}, {pipeline_mode = #tpu.pipeline_mode<synchronous>, transform_indices = @transform_4, window_bounds = array<i64: 3, 64>}, {transform_indices = @transform_5, window_bounds = array<i64: 512, 16>}]} {
    %c0 = arith.constant 0 : index
    %c0_0 = arith.constant 0 : index
    %0 = vector.load %arg1[%c0, %c0_0] : memref<512x32xf32, #tpu.memory_space<vmem>>, vector<512x32xf32>
    %1 = arith.truncf %0 : vector<512x32xf32> to vector<512x32xbf16>
    %c0_1 = arith.constant 0 : index
    %c0_2 = arith.constant 0 : index
    %2 = vector.load %arg5[%c0_1, %c0_2] : memref<3x64xf32, #tpu.memory_space<vmem>>, vector<1x64xf32>
    %c1 = arith.constant 1 : index
    %c0_3 = arith.constant 0 : index
    %3 = vector.load %arg5[%c1, %c0_3] : memref<3x64xf32, #tpu.memory_space<vmem>>, vector<1x32xf32>
    %c2 = arith.constant 2 : index
    %c0_4 = arith.constant 0 : index
    %4 = vector.load %arg5[%c2, %c0_4] : memref<3x64xf32, #tpu.memory_space<vmem>>, vector<1x16xf32>
    %c0_5 = arith.constant 0 : index
    %c0_6 = arith.constant 0 : index
    %5 = vector.load %arg2[%c0_5, %c0_6] : memref<32x64xbf16, #tpu.memory_space<vmem>>, vector<32x64xbf16>
    %cst = arith.constant dense<0.000000e+00> : vector<512x64xf32>
    %6 = tpu.matmul %1, %5, %cst {dimension_numbers = #tpu.dot_dimension_numbers<[1], [0], [0], [1], [0, 0, 1, 1], [], []>} : vector<512x32xbf16>, vector<32x64xbf16>, vector<512x64xf32> -> vector<512x64xf32>
    %7 = vector.broadcast %2 : vector<1x64xf32> to vector<512x64xf32>
    %8 = arith.addf %6, %7 : vector<512x64xf32>
    %cst_7 = arith.constant 0.000000e+00 : f32
    %9 = vector.broadcast %cst_7 : f32 to vector<512x64xf32>
    %10 = arith.maximumf %8, %9 : vector<512x64xf32>
    %11 = arith.truncf %10 : vector<512x64xf32> to vector<512x64xbf16>
    %c0_8 = arith.constant 0 : index
    %c0_9 = arith.constant 0 : index
    %12 = vector.load %arg3[%c0_8, %c0_9] : memref<64x32xbf16, #tpu.memory_space<vmem>>, vector<64x32xbf16>
    %cst_10 = arith.constant dense<0.000000e+00> : vector<512x32xf32>
    %13 = tpu.matmul %11, %12, %cst_10 {dimension_numbers = #tpu.dot_dimension_numbers<[1], [0], [0], [1], [0, 0, 1, 1], [], []>} : vector<512x64xbf16>, vector<64x32xbf16>, vector<512x32xf32> -> vector<512x32xf32>
    %14 = vector.broadcast %3 : vector<1x32xf32> to vector<512x32xf32>
    %15 = arith.addf %13, %14 : vector<512x32xf32>
    %cst_11 = arith.constant 0.000000e+00 : f32
    %16 = vector.broadcast %cst_11 : f32 to vector<512x32xf32>
    %17 = arith.maximumf %15, %16 : vector<512x32xf32>
    %18 = arith.truncf %17 : vector<512x32xf32> to vector<512x32xbf16>
    %c0_12 = arith.constant 0 : index
    %c0_13 = arith.constant 0 : index
    %19 = vector.load %arg4[%c0_12, %c0_13] : memref<32x16xbf16, #tpu.memory_space<vmem>>, vector<32x16xbf16>
    %cst_14 = arith.constant dense<0.000000e+00> : vector<512x16xf32>
    %20 = tpu.matmul %18, %19, %cst_14 {dimension_numbers = #tpu.dot_dimension_numbers<[1], [0], [0], [1], [0, 0, 1, 1], [], []>} : vector<512x32xbf16>, vector<32x16xbf16>, vector<512x16xf32> -> vector<512x16xf32>
    %21 = vector.broadcast %4 : vector<1x16xf32> to vector<512x16xf32>
    %22 = arith.addf %20, %21 : vector<512x16xf32>
    %c0_15 = arith.constant 0 : index
    %c0_16 = arith.constant 0 : index
    %23 = vector.load %arg6[%c0_15, %c0_16] : memref<512x16xf32, #tpu.memory_space<vmem>>, vector<512x16xf32>
    tpu.vector_store %arg6[%c0_15, %c0_16], %22 {strides = array<i32>} : memref<512x16xf32, #tpu.memory_space<vmem>>, vector<512x16xf32>,
    return
  }
  func.func @transform_0(%arg0: i32) -> (i32, i32) {
    %c0_i32 = arith.constant 0 : i32
    %c0_i32_0 = arith.constant 0 : i32
    return %arg0, %c0_i32 : i32, i32
  }
  func.func @transform_1(%arg0: i32) -> (i32, i32) {
    %c0_i32 = arith.constant 0 : i32
    %c0_i32_0 = arith.constant 0 : i32
    %c0_i32_1 = arith.constant 0 : i32
    return %c0_i32, %c0_i32_0 : i32, i32
  }
  func.func @transform_2(%arg0: i32) -> (i32, i32) {
    %c0_i32 = arith.constant 0 : i32
    %c0_i32_0 = arith.constant 0 : i32
    %c0_i32_1 = arith.constant 0 : i32
    return %c0_i32, %c0_i32_0 : i32, i32
  }
  func.func @transform_3(%arg0: i32) -> (i32, i32) {
    %c0_i32 = arith.constant 0 : i32
    %c0_i32_0 = arith.constant 0 : i32
    %c0_i32_1 = arith.constant 0 : i32
    return %c0_i32, %c0_i32_0 : i32, i32
  }
  func.func @transform_4(%arg0: i32) -> (i32, i32) {
    %c0_i32 = arith.constant 0 : i32
    %c0_i32_0 = arith.constant 0 : i32
    %c0_i32_1 = arith.constant 0 : i32
    return %c0_i32, %c0_i32_0 : i32, i32
  }
  func.func @transform_5(%arg0: i32) -> (i32, i32) {
    %c0_i32 = arith.constant 0 : i32
    %c0_i32_0 = arith.constant 0 : i32
    return %arg0, %c0_i32 : i32, i32
  }
}

</mosaic_0001>

<llo_original>
// kernel: _mlp_forward_impl.1
$region0: #{_mlp_forward_impl.1}
  #allocation0 [shape = 'u32[]', space=smem, size = 0x4, offset = 0x4, fixed_abs, tag = 'smem constant byte address 0x4 - core index']
  #allocation1 [shape = 'u32[72,128]{1,0:T(1,128)}', space=vmem, size = 0x9000, scoped, tag = 'internal scratch']
  %s0 = inlined_call_operand.vmem [shape: f32[512,32], index: 0, kind: input, shape index: {}]
  %s1 = inlined_call_operand.vmem [shape: bf16[32,64], index: 1, kind: input, shape index: {}]
  %s2 = inlined_call_operand.vmem [shape: bf16[64,32], index: 2, kind: input, shape index: {}]
  %s3 = inlined_call_operand.vmem [shape: bf16[32,16], index: 3, kind: input, shape index: {}]
  %s4 = inlined_call_operand.vmem [shape: f32[3,64], index: 4, kind: input, shape index: {}]
  %s5 = inlined_call_operand.vmem [shape: f32[512,16], index: 5, kind: output, shape index: {}]
  %s6 = sld [smem:[#allocation0]]
  $region30: #{_mlp_forward_impl.1} parent=0
    _
  %s8 = ssub.s32 1, %s6
  %s9 = scalar_select 0, %s8, %s6
  // Predicated region
  $region2: #{_mlp_forward_impl.1} parent=0 // pred_check
    _
  $region3: #{_mlp_forward_impl.1} parent=0 // pred_check_branch
    %11 = sbr.rel (0) target = $region5
  $region4: #{_mlp_forward_impl.1} parent=0 // pred_region
    _
  $region5: #{_mlp_forward_impl.1} parent=0 // pred_fallthru
    _
  // Predicated region
  $region6: #{_mlp_forward_impl.1} parent=0 // pred_check
    _
  $region7: #{_mlp_forward_impl.1} parent=0 // pred_check_branch
    %13 = sbr.rel (0) target = $region9
  $region8: #{_mlp_forward_impl.1} parent=0 // pred_region
    _
  $region9: #{_mlp_forward_impl.1} parent=0 // pred_fallthru
    _
  // Predicated region
  $region10: #{_mlp_forward_impl.1} parent=0 // pred_check
    _
  $region11: #{_mlp_forward_impl.1} parent=0 // pred_check_branch
    %15 = sbr.rel (0) target = $region13
  $region12: #{_mlp_forward_impl.1} parent=0 // pred_region
    _
  $region13: #{_mlp_forward_impl.1} parent=0 // pred_fallthru
    _
  // Predicated region
  $region14: #{_mlp_forward_impl.1} parent=0 // pred_check
    _
  $region15: #{_mlp_forward_impl.1} parent=0 // pred_check_branch
    %17 = sbr.rel (0) target = $region17
  $region16: #{_mlp_forward_impl.1} parent=0 // pred_region
    _
  $region17: #{_mlp_forward_impl.1} parent=0 // pred_fallthru
    _
  // Predicated region
  $region18: #{_mlp_forward_impl.1} parent=0 // pred_check
    _
  $region19: #{_mlp_forward_impl.1} parent=0 // pred_check_branch
    %19 = sbr.rel (0) target = $region21
  $region20: #{_mlp_forward_impl.1} parent=0 // pred_region
    _
  $region21: #{_mlp_forward_impl.1} parent=0 // pred_fallthru
    _
  %v21 = vld [vmem:[%s0] sm:$0xff]
  %v22 = vld [vmem:[%s0 + $0x8] sm:$0xff]
  %v23 = vld [vmem:[%s0 + $0x10] sm:$0xff]
  %v24 = vld [vmem:[%s0 + $0x18] sm:$0xff]
  %v25 = vld [vmem:[%s0 + $0x20] sm:$0xff]
  %v26 = vld [vmem:[%s0 + $0x28] sm:$0xff]
  %v27 = vld [vmem:[%s0 + $0x30] sm:$0xff]
  %v28 = vld [vmem:[%s0 + $0x38] sm:$0xff]
  %v29 = vld [vmem:[%s0 + $0x40] sm:$0xff]
  %v30 = vld [vmem:[%s0 + $0x48] sm:$0xff]
  %v31 = vld [vmem:[%s0 + $0x50] sm:$0xff]
  %v32 = vld [vmem:[%s0 + $0x58] sm:$0xff]
  %v33 = vld [vmem:[%s0 + $0x60] sm:$0xff]
  %v34 = vld [vmem:[%s0 + $0x68] sm:$0xff]
  %v35 = vld [vmem:[%s0 + $0x70] sm:$0xff]
  %v36 = vld [vmem:[%s0 + $0x78] sm:$0xff]
  %v37 = vld [vmem:[%s0 + $0x80] sm:$0xff]
  %v38 = vld [vmem:[%s0 + $0x88] sm:$0xff]
  %v39 = vld [vmem:[%s0 + $0x90] sm:$0xff]
  %v40 = vld [vmem:[%s0 + $0x98] sm:$0xff]
  %v41 = vld [vmem:[%s0 + $0xa0] sm:$0xff]
  %v42 = vld [vmem:[%s0 + $0xa8] sm:$0xff]
  %v43 = vld [vmem:[%s0 + $0xb0] sm:$0xff]
  %v44 = vld [vmem:[%s0 + $0xb8] sm:$0xff]
  %v45 = vld [vmem:[%s0 + $0xc0] sm:$0xff]
  %v46 = vld [vmem:[%s0 + $0xc8] sm:$0xff]
  %v47 = vld [vmem:[%s0 + $0xd0] sm:$0xff]
  %v48 = vld [vmem:[%s0 + $0xd8] sm:$0xff]
  %v49 = vld [vmem:[%s0 + $0xe0] sm:$0xff]
  %v50 = vld [vmem:[%s0 + $0xe8] sm:$0xff]
  %v51 = vld [vmem:[%s0 + $0xf0] sm:$0xff]
  %v52 = vld [vmem:[%s0 + $0xf8] sm:$0xff]
  %v53 = vld [vmem:[%s0 + $0x100] sm:$0xff]
  %v54 = vld [vmem:[%s0 + $0x108] sm:$0xff]
  %v55 = vld [vmem:[%s0 + $0x110] sm:$0xff]
  %v56 = vld [vmem:[%s0 + $0x118] sm:$0xff]
  %v57 = vld [vmem:[%s0 + $0x120] sm:$0xff]
  %v58 = vld [vmem:[%s0 + $0x128] sm:$0xff]
  %v59 = vld [vmem:[%s0 + $0x130] sm:$0xff]
  %v60 = vld [vmem:[%s0 + $0x138] sm:$0xff]
  %v61 = vld [vmem:[%s0 + $0x140] sm:$0xff]
  %v62 = vld [vmem:[%s0 + $0x148] sm:$0xff]
  %v63 = vld [vmem:[%s0 + $0x150] sm:$0xff]
  %v64 = vld [vmem:[%s0 + $0x158] sm:$0xff]
  %v65 = vld [vmem:[%s0 + $0x160] sm:$0xff]
  %v66 = vld [vmem:[%s0 + $0x168] sm:$0xff]
  %v67 = vld [vmem:[%s0 + $0x170] sm:$0xff]
  %v68 = vld [vmem:[%s0 + $0x178] sm:$0xff]
  %v69 = vld [vmem:[%s0 + $0x180] sm:$0xff]
  %v70 = vld [vmem:[%s0 + $0x188] sm:$0xff]
  %v71 = vld [vmem:[%s0 + $0x190] sm:$0xff]
  %v72 = vld [vmem:[%s0 + $0x198] sm:$0xff]
  %v73 = vld [vmem:[%s0 + $0x1a0] sm:$0xff]
  %v74 = vld [vmem:[%s0 + $0x1a8] sm:$0xff]
  %v75 = vld [vmem:[%s0 + $0x1b0] sm:$0xff]
  %v76 = vld [vmem:[%s0 + $0x1b8] sm:$0xff]
  %v77 = vld [vmem:[%s0 + $0x1c0] sm:$0xff]
  %v78 = vld [vmem:[%s0 + $0x1c8] sm:$0xff]
  %v79 = vld [vmem:[%s0 + $0x1d0] sm:$0xff]
  %v80 = vld [vmem:[%s0 + $0x1d8] sm:$0xff]
  %v81 = vld [vmem:[%s0 + $0x1e0] sm:$0xff]
  %v82 = vld [vmem:[%s0 + $0x1e8] sm:$0xff]
  %v83 = vld [vmem:[%s0 + $0x1f0] sm:$0xff]
  %v84 = vld [vmem:[%s0 + $0x1f8] sm:$0xff]
  %v85 = vpack.c.bf16 %v22, %v21
  %v86 = vpack.c.bf16 %v24, %v23
  %v87 = vpack.c.bf16 %v26, %v25
  %v88 = vpack.c.bf16 %v28, %v27
  %v89 = vpack.c.bf16 %v30, %v29
  %v90 = vpack.c.bf16 %v32, %v31
  %v91 = vpack.c.bf16 %v34, %v33
  %v92 = vpack.c.bf16 %v36, %v35
  %v93 = vpack.c.bf16 %v38, %v37
  %v94 = vpack.c.bf16 %v40, %v39
  %v95 = vpack.c.bf16 %v42, %v41
  %v96 = vpack.c.bf16 %v44, %v43
  %v97 = vpack.c.bf16 %v46, %v45
  %v98 = vpack.c.bf16 %v48, %v47
  %v99 = vpack.c.bf16 %v50, %v49
  %v100 = vpack.c.bf16 %v52, %v51
  %v101 = vpack.c.bf16 %v54, %v53
  %v102 = vpack.c.bf16 %v56, %v55
  %v103 = vpack.c.bf16 %v58, %v57
  %v104 = vpack.c.bf16 %v60, %v59
  %v105 = vpack.c.bf16 %v62, %v61
  %v106 = vpack.c.bf16 %v64, %v63
  %v107 = vpack.c.bf16 %v66, %v65
  %v108 = vpack.c.bf16 %v68, %v67
  %v109 = vpack.c.bf16 %v70, %v69
  %v110 = vpack.c.bf16 %v72, %v71
  %v111 = vpack.c.bf16 %v74, %v73
  %v112 = vpack.c.bf16 %v76, %v75
  %v113 = vpack.c.bf16 %v78, %v77
  %v114 = vpack.c.bf16 %v80, %v79
  %v115 = vpack.c.bf16 %v82, %v81
  %v116 = vpack.c.bf16 %v84, %v83
  %v117 = vld [vmem:[%s4] sm:$0x1]
  %v118 = vld [vmem:[%s4 + $0x1] sm:$0x1]
  %v119 = vld [vmem:[%s4 + $0x2] sm:$0x1]
  %v120 = vld [vmem:[%s1] sm:$0xf]
  %v121 = vld [vmem:[%s1 + $0x4] sm:$0xf]
  %v122 = vld [vmem:[%s1 + $0x8] sm:$0xf]
  %v123 = vld [vmem:[%s1 + $0xc] sm:$0xf]
  %v124 = vperm.slane %v117, 0
  %v129 = vunpack.c.l.b16 %v120
  %v130 = vunpack.c.l.b16 %v121
  %v131 = vunpack.c.l.b16 %v122
  %v132 = vunpack.c.l.b16 %v123
  %v133 = vpack.c.b16 %v130, %v129
  %v134 = vpack.c.b16 %v132, %v131
  %vm137 = vcmask 261120
  %v139 = vsel %vm137, %v85, 0
  %v142 = vsel %vm137, %v86, 0
  %v145 = vsel %vm137, %v87, 0
  %v148 = vsel %vm137, %v88, 0
  %v151 = vsel %vm137, %v89, 0
  %v154 = vsel %vm137, %v90, 0
  %v157 = vsel %vm137, %v91, 0
  %v160 = vsel %vm137, %v92, 0
  %v163 = vsel %vm137, %v93, 0
  %v166 = vsel %vm137, %v94, 0
  %v169 = vsel %vm137, %v95, 0
  %v172 = vsel %vm137, %v96, 0
  %v175 = vsel %vm137, %v97, 0
  %v178 = vsel %vm137, %v98, 0
  %v181 = vsel %vm137, %v99, 0
  %v184 = vsel %vm137, %v100, 0
  %v187 = vsel %vm137, %v101, 0
  %v190 = vsel %vm137, %v102, 0
  %v193 = vsel %vm137, %v103, 0
  %v196 = vsel %vm137, %v104, 0
  %v199 = vsel %vm137, %v105, 0
  %v202 = vsel %vm137, %v106, 0
  %v205 = vsel %vm137, %v107, 0
  %v208 = vsel %vm137, %v108, 0
  %v211 = vsel %vm137, %v109, 0
  %v214 = vsel %vm137, %v110, 0
  %v217 = vsel %vm137, %v111, 0
  %v220 = vsel %vm137, %v112, 0
  %v223 = vsel %vm137, %v113, 0
  %v226 = vsel %vm137, %v114, 0
  %v229 = vsel %vm137, %v115, 0
  %v232 = vsel %vm137, %v116, 0
  %234 = vmatpush.bf16.msra.mxu0 0
  %235 = vmatpush.bf16.msra.mxu0 0
  %236 = vmatpush.bf16.msra.mxu0 0
  %237 = vmatpush.bf16.msra.mxu0 0
  %238 = vmatpush.bf16.msra.mxu0 0
  %239 = vmatpush.bf16.msra.mxu0 0
  %240 = vmatpush.bf16.msra.mxu0 %v134
  %241 = vmatpush.bf16.msra.mxu0 %v133
  %242 = vmatmul.bf16.gmra.mxu0 %v139
  %v243 = vpop.f32.mrf.mxu0
  %v244 = vadd.f32 %v124, %v243
  %v245 = vpop.f32.mrf.mxu0
  %v246 = vadd.f32 %v124, %v245
  %247 = vmatmul.bf16.gmra.mxu0 %v142
  %v248 = vpop.f32.mrf.mxu0
  %v249 = vadd.f32 %v124, %v248
  %v250 = vpop.f32.mrf.mxu0
  %v251 = vadd.f32 %v124, %v250
  %252 = vmatmul.bf16.gmra.mxu0 %v145
  %v253 = vpop.f32.mrf.mxu0
  %v254 = vadd.f32 %v124, %v253
  %v255 = vpop.f32.mrf.mxu0
  %v256 = vadd.f32 %v124, %v255
  %257 = vmatmul.bf16.gmra.mxu0 %v148
  %v258 = vpop.f32.mrf.mxu0
  %v259 = vadd.f32 %v124, %v258
  %v260 = vpop.f32.mrf.mxu0
  %v261 = vadd.f32 %v124, %v260
  %262 = vmatmul.bf16.gmra.mxu0 %v151
  %v263 = vpop.f32.mrf.mxu0
  %v264 = vadd.f32 %v124, %v263
  %v265 = vpop.f32.mrf.mxu0
  %v266 = vadd.f32 %v124, %v265
  %267 = vmatmul.bf16.gmra.mxu0 %v154
  %v268 = vpop.f32.mrf.mxu0
  %v269 = vadd.f32 %v124, %v268
  %v270 = vpop.f32.mrf.mxu0
  %v271 = vadd.f32 %v124, %v270
  %272 = vmatmul.bf16.gmra.mxu0 %v157
  %v273 = vpop.f32.mrf.mxu0
  %v274 = vadd.f32 %v124, %v273
  %v275 = vpop.f32.mrf.mxu0
  %v276 = vadd.f32 %v124, %v275
  %277 = vmatmul.bf16.gmra.mxu0 %v160
  %v278 = vpop.f32.mrf.mxu0
  %v279 = vadd.f32 %v124, %v278
  %v280 = vpop.f32.mrf.mxu0
  %v281 = vadd.f32 %v124, %v280
  %282 = vmatmul.bf16.gmra.mxu0 %v163
  %v283 = vpop.f32.mrf.mxu0
  %v284 = vadd.f32 %v124, %v283
  %v285 = vpop.f32.mrf.mxu0
  %v286 = vadd.f32 %v124, %v285
  %287 = vmatmul.bf16.gmra.mxu0 %v166
  %v288 = vpop.f32.mrf.mxu0
  %v289 = vadd.f32 %v124, %v288
  %v290 = vpop.f32.mrf.mxu0
  %v291 = vadd.f32 %v124, %v290
  %292 = vmatmul.bf16.gmra.mxu0 %v169
  %v293 = vpop.f32.mrf.mxu0
  %v294 = vadd.f32 %v124, %v293
  %v295 = vpop.f32.mrf.mxu0
  %v296 = vadd.f32 %v124, %v295
  %297 = vmatmul.bf16.gmra.mxu0 %v172
  %v298 = vpop.f32.mrf.mxu0
  %v299 = vadd.f32 %v124, %v298
  %v300 = vpop.f32.mrf.mxu0
  %v301 = vadd.f32 %v124, %v300
  %302 = vmatmul.bf16.gmra.mxu0 %v175
  %v303 = vpop.f32.mrf.mxu0
  %v304 = vadd.f32 %v124, %v303
  %v305 = vpop.f32.mrf.mxu0
  %v306 = vadd.f32 %v124, %v305
  %307 = vmatmul.bf16.gmra.mxu0 %v178
  %v308 = vpop.f32.mrf.mxu0
  %v309 = vadd.f32 %v124, %v308
  %v310 = vpop.f32.mrf.mxu0
  %v311 = vadd.f32 %v124, %v310
  %312 = vmatmul.bf16.gmra.mxu0 %v181
  %v313 = vpop.f32.mrf.mxu0
  %v314 = vadd.f32 %v124, %v313
  %v315 = vpop.f32.mrf.mxu0
  %v316 = vadd.f32 %v124, %v315
  %317 = vmatmul.bf16.gmra.mxu0 %v184
  %v318 = vpop.f32.mrf.mxu0
  %v319 = vadd.f32 %v124, %v318
  %v320 = vpop.f32.mrf.mxu0
  %v321 = vadd.f32 %v124, %v320
  %322 = vmatmul.bf16.gmra.mxu0 %v187
  %v323 = vpop.f32.mrf.mxu0
  %v324 = vadd.f32 %v124, %v323
  %v325 = vpop.f32.mrf.mxu0
  %v326 = vadd.f32 %v124, %v325
  %327 = vmatmul.bf16.gmra.mxu0 %v190
  %v328 = vpop.f32.mrf.mxu0
  %v329 = vadd.f32 %v124, %v328
  %v330 = vpop.f32.mrf.mxu0
  %v331 = vadd.f32 %v124, %v330
  %332 = vmatmul.bf16.gmra.mxu0 %v193
  %v333 = vpop.f32.mrf.mxu0
  %v334 = vadd.f32 %v124, %v333
  %v335 = vpop.f32.mrf.mxu0
  %v336 = vadd.f32 %v124, %v335
  %337 = vmatmul.bf16.gmra.mxu0 %v196
  %v338 = vpop.f32.mrf.mxu0
  %v339 = vadd.f32 %v124, %v338
  %v340 = vpop.f32.mrf.mxu0
  %v341 = vadd.f32 %v124, %v340
  %342 = vmatmul.bf16.gmra.mxu0 %v199
  %v343 = vpop.f32.mrf.mxu0
  %v344 = vadd.f32 %v124, %v343
  %v345 = vpop.f32.mrf.mxu0
  %v346 = vadd.f32 %v124, %v345
  %347 = vmatmul.bf16.gmra.mxu0 %v202
  %v348 = vpop.f32.mrf.mxu0
  %v349 = vadd.f32 %v124, %v348
  %v350 = vpop.f32.mrf.mxu0
  %v351 = vadd.f32 %v124, %v350
  %352 = vmatmul.bf16.gmra.mxu0 %v205
  %v353 = vpop.f32.mrf.mxu0
  %v354 = vadd.f32 %v124, %v353
  %v355 = vpop.f32.mrf.mxu0
  %v356 = vadd.f32 %v124, %v355
  %357 = vmatmul.bf16.gmra.mxu0 %v208
  %v358 = vpop.f32.mrf.mxu0
  %v359 = vadd.f32 %v124, %v358
  %v360 = vpop.f32.mrf.mxu0
  %v361 = vadd.f32 %v124, %v360
  %362 = vmatmul.bf16.gmra.mxu0 %v211
  %v363 = vpop.f32.mrf.mxu0
  %v364 = vadd.f32 %v124, %v363
  %v365 = vpop.f32.mrf.mxu0
  %v366 = vadd.f32 %v124, %v365
  %367 = vmatmul.bf16.gmra.mxu0 %v214
  %v368 = vpop.f32.mrf.mxu0
  %v369 = vadd.f32 %v124, %v368
  %v370 = vpop.f32.mrf.mxu0
  %v371 = vadd.f32 %v124, %v370
  %372 = vmatmul.bf16.gmra.mxu0 %v217
  %v373 = vpop.f32.mrf.mxu0
  %v374 = vadd.f32 %v124, %v373
  %v375 = vpop.f32.mrf.mxu0
  %v376 = vadd.f32 %v124, %v375
  %377 = vmatmul.bf16.gmra.mxu0 %v220
  %v378 = vpop.f32.mrf.mxu0
  %v379 = vadd.f32 %v124, %v378
  %v380 = vpop.f32.mrf.mxu0
  %v381 = vadd.f32 %v124, %v380
  %382 = vmatmul.bf16.gmra.mxu0 %v223
  %v383 = vpop.f32.mrf.mxu0
  %v384 = vadd.f32 %v124, %v383
  %v385 = vpop.f32.mrf.mxu0
  %v386 = vadd.f32 %v124, %v385
  %387 = vmatmul.bf16.gmra.mxu0 %v226
  %v388 = vpop.f32.mrf.mxu0
  %v389 = vadd.f32 %v124, %v388
  %v390 = vpop.f32.mrf.mxu0
  %v391 = vadd.f32 %v124, %v390
  %392 = vmatmul.bf16.gmra.mxu0 %v229
  %v393 = vpop.f32.mrf.mxu0
  %v394 = vadd.f32 %v124, %v393
  %v395 = vpop.f32.mrf.mxu0
  %v396 = vadd.f32 %v124, %v395
  %397 = vmatmul.bf16.gmra.mxu0 %v232
  %v398 = vpop.f32.mrf.mxu0
  %v399 = vadd.f32 %v124, %v398
  %v400 = vpop.f32.mrf.mxu0
  %v401 = vadd.f32 %v124, %v400
  %402 = vdwg.mxu0
  %v403 = vmax.f32 %v244, 0.0
  %v404 = vmax.f32 %v246, 0.0
  %v405 = vmax.f32 %v249, 0.0
  %v406 = vmax.f32 %v251, 0.0
  %v407 = vmax.f32 %v254, 0.0
  %v408 = vmax.f32 %v256, 0.0
  %v409 = vmax.f32 %v259, 0.0
  %v410 = vmax.f32 %v261, 0.0
  %v411 = vmax.f32 %v264, 0.0
  %v412 = vmax.f32 %v266, 0.0
  %v413 = vmax.f32 %v269, 0.0
  %v414 = vmax.f32 %v271, 0.0
  %v415 = vmax.f32 %v274, 0.0
  %v416 = vmax.f32 %v276, 0.0
  %v417 = vmax.f32 %v279, 0.0
  %v418 = vmax.f32 %v281, 0.0
  %v419 = vmax.f32 %v284, 0.0
  %v420 = vmax.f32 %v286, 0.0
  %v421 = vmax.f32 %v289, 0.0
  %v422 = vmax.f32 %v291, 0.0
  %v423 = vmax.f32 %v294, 0.0
  %v424 = vmax.f32 %v296, 0.0
  %v425 = vmax.f32 %v299, 0.0
  %v426 = vmax.f32 %v301, 0.0
  %v427 = vmax.f32 %v304, 0.0
  %v428 = vmax.f32 %v306, 0.0
  %v429 = vmax.f32 %v309, 0.0
  %v430 = vmax.f32 %v311, 0.0
  %v431 = vmax.f32 %v314, 0.0
  %v432 = vmax.f32 %v316, 0.0
  %v433 = vmax.f32 %v319, 0.0
  %v434 = vmax.f32 %v321, 0.0
  %v435 = vmax.f32 %v324, 0.0
  %v436 = vmax.f32 %v326, 0.0
  %v437 = vmax.f32 %v329, 0.0
  %v438 = vmax.f32 %v331, 0.0
  %v439 = vmax.f32 %v334, 0.0
  %v440 = vmax.f32 %v336, 0.0
  %v441 = vmax.f32 %v339, 0.0
  %v442 = vmax.f32 %v341, 0.0
  %v443 = vmax.f32 %v344, 0.0
  %v444 = vmax.f32 %v346, 0.0
  %v445 = vmax.f32 %v349, 0.0
  %v446 = vmax.f32 %v351, 0.0
  %v447 = vmax.f32 %v354, 0.0
  %v448 = vmax.f32 %v356, 0.0
  %v449 = vmax.f32 %v359, 0.0
  %v450 = vmax.f32 %v361, 0.0
  %v451 = vmax.f32 %v364, 0.0
  %v452 = vmax.f32 %v366, 0.0
  %v453 = vmax.f32 %v369, 0.0
  %v454 = vmax.f32 %v371, 0.0
  %v455 = vmax.f32 %v374, 0.0
  %v456 = vmax.f32 %v376, 0.0
  %v457 = vmax.f32 %v379, 0.0
  %v458 = vmax.f32 %v381, 0.0
  %v459 = vmax.f32 %v384, 0.0
  %v460 = vmax.f32 %v386, 0.0
  %v461 = vmax.f32 %v389, 0.0
  %v462 = vmax.f32 %v391, 0.0
  %v463 = vmax.f32 %v394, 0.0
  %v464 = vmax.f32 %v396, 0.0
  %v465 = vmax.f32 %v399, 0.0
  %v466 = vmax.f32 %v401, 0.0
  %v467 = vpack.c.bf16 %v404, %v403
  %v468 = vpack.c.bf16 %v406, %v405
  %v469 = vpack.c.bf16 %v408, %v407
  %v470 = vpack.c.bf16 %v410, %v409
  %v471 = vpack.c.bf16 %v412, %v411
  %v472 = vpack.c.bf16 %v414, %v413
  %v473 = vpack.c.bf16 %v416, %v415
  %v474 = vpack.c.bf16 %v418, %v417
  %v475 = vpack.c.bf16 %v420, %v419
  %v476 = vpack.c.bf16 %v422, %v421
  %v477 = vpack.c.bf16 %v424, %v423
  %v478 = vpack.c.bf16 %v426, %v425
  %v479 = vpack.c.bf16 %v428, %v427
  %v480 = vpack.c.bf16 %v430, %v429
  %v481 = vpack.c.bf16 %v432, %v431
  %v482 = vpack.c.bf16 %v434, %v433
  %v483 = vpack.c.bf16 %v436, %v435
  %v484 = vpack.c.bf16 %v438, %v437
  %v485 = vpack.c.bf16 %v440, %v439
  %v486 = vpack.c.bf16 %v442, %v441
  %v487 = vpack.c.bf16 %v444, %v443
  %v488 = vpack.c.bf16 %v446, %v445
  %v489 = vpack.c.bf16 %v448, %v447
  %v490 = vpack.c.bf16 %v450, %v449
  %v491 = vpack.c.bf16 %v452, %v451
  %v492 = vpack.c.bf16 %v454, %v453
  %v493 = vpack.c.bf16 %v456, %v455
  %v494 = vpack.c.bf16 %v458, %v457
  %v495 = vpack.c.bf16 %v460, %v459
  %v496 = vpack.c.bf16 %v462, %v461
  %v497 = vpack.c.bf16 %v464, %v463
  %v498 = vpack.c.bf16 %v466, %v465
  %v499 = vld [vmem:[%s2] sm:$0xf]
  %v500 = vld [vmem:[%s2 + $0x4] sm:$0xf]
  %v501 = vld [vmem:[%s2 + $0x8] sm:$0xf]
  %v502 = vld [vmem:[%s2 + $0xc] sm:$0xf]
  %v503 = vld [vmem:[%s2 + $0x10] sm:$0xf]
  %v504 = vld [vmem:[%s2 + $0x14] sm:$0xf]
  %v505 = vld [vmem:[%s2 + $0x18] sm:$0xf]
  %v506 = vld [vmem:[%s2 + $0x1c] sm:$0xf]
  %v507 = vperm.slane %v118, 0
  %v516 = vunpack.c.l.b16 %v499
  %v517 = vunpack.c.l.b16 %v500
  %v518 = vunpack.c.l.b16 %v501
  %v519 = vunpack.c.l.b16 %v502
  %v520 = vunpack.c.l.b16 %v503
  %v521 = vunpack.c.l.b16 %v504
  %v522 = vunpack.c.l.b16 %v505
  %v523 = vunpack.c.l.b16 %v506
  %v524 = vpack.c.b16 %v517, %v516
  %v525 = vpack.c.b16 %v519, %v518
  %v526 = vpack.c.b16 %v521, %v520
  %v527 = vpack.c.b16 %v523, %v522
  %vm532 = vcmask 523264
  %v534 = vsel %vm532, %v467, 0
  %v537 = vsel %vm532, %v468, 0
  %v540 = vsel %vm532, %v469, 0
  %v543 = vsel %vm532, %v470, 0
  %v546 = vsel %vm532, %v471, 0
  %v549 = vsel %vm532, %v472, 0
  %v552 = vsel %vm532, %v473, 0
  %v555 = vsel %vm532, %v474, 0
  %v558 = vsel %vm532, %v475, 0
  %v561 = vsel %vm532, %v476, 0
  %v564 = vsel %vm532, %v477, 0
  %v567 = vsel %vm532, %v478, 0
  %v570 = vsel %vm532, %v479, 0
  %v573 = vsel %vm532, %v480, 0
  %v576 = vsel %vm532, %v481, 0
  %v579 = vsel %vm532, %v482, 0
  %v582 = vsel %vm532, %v483, 0
  %v585 = vsel %vm532, %v484, 0
  %v588 = vsel %vm532, %v485, 0
  %v591 = vsel %vm532, %v486, 0
  %v594 = vsel %vm532, %v487, 0
  %v597 = vsel %vm532, %v488, 0
  %v600 = vsel %vm532, %v489, 0
  %v603 = vsel %vm532, %v490, 0
  %v606 = vsel %vm532, %v491, 0
  %v609 = vsel %vm532, %v492, 0
  %v612 = vsel %vm532, %v493, 0
  %v615 = vsel %vm532, %v494, 0
  %v618 = vsel %vm532, %v495, 0
  %v621 = vsel %vm532, %v496, 0
  %v624 = vsel %vm532, %v497, 0
  %v627 = vsel %vm532, %v498, 0
  %629 = vmatpush.bf16.msra.mxu0 0
  %630 = vmatpush.bf16.msra.mxu0 0
  %631 = vmatpush.bf16.msra.mxu0 0
  %632 = vmatpush.bf16.msra.mxu0 0
  %633 = vmatpush.bf16.msra.mxu0 %v527
  %634 = vmatpush.bf16.msra.mxu0 %v526
  %635 = vmatpush.bf16.msra.mxu0 %v525
  %636 = vmatpush.bf16.msra.mxu0 %v524
  %637 = vmatmul.bf16.gmra.mxu0 %v534
  %v638 = vpop.f32.mrf.mxu0
  %v639 = vadd.f32 %v507, %v638
  %v640 = vpop.f32.mrf.mxu0
  %v641 = vadd.f32 %v507, %v640
  %642 = vmatmul.bf16.gmra.mxu0 %v537
  %v643 = vpop.f32.mrf.mxu0
  %v644 = vadd.f32 %v507, %v643
  %v645 = vpop.f32.mrf.mxu0
  %v646 = vadd.f32 %v507, %v645
  %647 = vmatmul.bf16.gmra.mxu0 %v540
  %v648 = vpop.f32.mrf.mxu0
  %v649 = vadd.f32 %v507, %v648
  %v650 = vpop.f32.mrf.mxu0
  %v651 = vadd.f32 %v507, %v650
  %652 = vmatmul.bf16.gmra.mxu0 %v543
  %v653 = vpop.f32.mrf.mxu0
  %v654 = vadd.f32 %v507, %v653
  %v655 = vpop.f32.mrf.mxu0
  %v656 = vadd.f32 %v507, %v655
  %657 = vmatmul.bf16.gmra.mxu0 %v546
  %v658 = vpop.f32.mrf.mxu0
  %v659 = vadd.f32 %v507, %v658
  %v660 = vpop.f32.mrf.mxu0
  %v661 = vadd.f32 %v507, %v660
  %662 = vmatmul.bf16.gmra.mxu0 %v549
  %v663 = vpop.f32.mrf.mxu0
  %v664 = vadd.f32 %v507, %v663
  %v665 = vpop.f32.mrf.mxu0
  %v666 = vadd.f32 %v507, %v665
  %667 = vmatmul.bf16.gmra.mxu0 %v552
  %v668 = vpop.f32.mrf.mxu0
  %v669 = vadd.f32 %v507, %v668
  %v670 = vpop.f32.mrf.mxu0
  %v671 = vadd.f32 %v507, %v670
  %672 = vmatmul.bf16.gmra.mxu0 %v555
  %v673 = vpop.f32.mrf.mxu0
  %v674 = vadd.f32 %v507, %v673
  %v675 = vpop.f32.mrf.mxu0
  %v676 = vadd.f32 %v507, %v675
  %677 = vmatmul.bf16.gmra.mxu0 %v558
  %v678 = vpop.f32.mrf.mxu0
  %v679 = vadd.f32 %v507, %v678
  %v680 = vpop.f32.mrf.mxu0
  %v681 = vadd.f32 %v507, %v680
  %682 = vmatmul.bf16.gmra.mxu0 %v561
  %v683 = vpop.f32.mrf.mxu0
  %v684 = vadd.f32 %v507, %v683
  %v685 = vpop.f32.mrf.mxu0
  %v686 = vadd.f32 %v507, %v685
  %687 = vmatmul.bf16.gmra.mxu0 %v564
  %v688 = vpop.f32.mrf.mxu0
  %v689 = vadd.f32 %v507, %v688
  %v690 = vpop.f32.mrf.mxu0
  %v691 = vadd.f32 %v507, %v690
  %692 = vmatmul.bf16.gmra.mxu0 %v567
  %v693 = vpop.f32.mrf.mxu0
  %v694 = vadd.f32 %v507, %v693
  %v695 = vpop.f32.mrf.mxu0
  %v696 = vadd.f32 %v507, %v695
  %697 = vmatmul.bf16.gmra.mxu0 %v570
  %v698 = vpop.f32.mrf.mxu0
  %v699 = vadd.f32 %v507, %v698
  %v700 = vpop.f32.mrf.mxu0
  %v701 = vadd.f32 %v507, %v700
  %702 = vmatmul.bf16.gmra.mxu0 %v573
  %v703 = vpop.f32.mrf.mxu0
  %v704 = vadd.f32 %v507, %v703
  %v705 = vpop.f32.mrf.mxu0
  %v706 = vadd.f32 %v507, %v705
  %707 = vmatmul.bf16.gmra.mxu0 %v576
  %v708 = vpop.f32.mrf.mxu0
  %v709 = vadd.f32 %v507, %v708
  %v710 = vpop.f32.mrf.mxu0
  %v711 = vadd.f32 %v507, %v710
  %712 = vmatmul.bf16.gmra.mxu0 %v579
  %v713 = vpop.f32.mrf.mxu0
  %v714 = vadd.f32 %v507, %v713
  %v715 = vpop.f32.mrf.mxu0
  %v716 = vadd.f32 %v507, %v715
  %717 = vmatmul.bf16.gmra.mxu0 %v582
  %v718 = vpop.f32.mrf.mxu0
  %v719 = vadd.f32 %v507, %v718
  %v720 = vpop.f32.mrf.mxu0
  %v721 = vadd.f32 %v507, %v720
  %722 = vmatmul.bf16.gmra.mxu0 %v585
  %v723 = vpop.f32.mrf.mxu0
  %v724 = vadd.f32 %v507, %v723
  %v725 = vpop.f32.mrf.mxu0
  %v726 = vadd.f32 %v507, %v725
  %727 = vmatmul.bf16.gmra.mxu0 %v588
  %v728 = vpop.f32.mrf.mxu0
  %v729 = vadd.f32 %v507, %v728
  %v730 = vpop.f32.mrf.mxu0
  %v731 = vadd.f32 %v507, %v730
  %732 = vmatmul.bf16.gmra.mxu0 %v591
  %v733 = vpop.f32.mrf.mxu0
  %v734 = vadd.f32 %v507, %v733
  %v735 = vpop.f32.mrf.mxu0
  %v736 = vadd.f32 %v507, %v735
  %737 = vmatmul.bf16.gmra.mxu0 %v594
  %v738 = vpop.f32.mrf.mxu0
  %v739 = vadd.f32 %v507, %v738
  %v740 = vpop.f32.mrf.mxu0
  %v741 = vadd.f32 %v507, %v740
  %742 = vmatmul.bf16.gmra.mxu0 %v597
  %v743 = vpop.f32.mrf.mxu0
  %v744 = vadd.f32 %v507, %v743
  %v745 = vpop.f32.mrf.mxu0
  %v746 = vadd.f32 %v507, %v745
  %747 = vmatmul.bf16.gmra.mxu0 %v600
  %v748 = vpop.f32.mrf.mxu0
  %v749 = vadd.f32 %v507, %v748
  %v750 = vpop.f32.mrf.mxu0
  %v751 = vadd.f32 %v507, %v750
  %752 = vmatmul.bf16.gmra.mxu0 %v603
  %v753 = vpop.f32.mrf.mxu0
  %v754 = vadd.f32 %v507, %v753
  %v755 = vpop.f32.mrf.mxu0
  %v756 = vadd.f32 %v507, %v755
  %757 = vmatmul.bf16.gmra.mxu0 %v606
  %v758 = vpop.f32.mrf.mxu0
  %v759 = vadd.f32 %v507, %v758
  %v760 = vpop.f32.mrf.mxu0
  %v761 = vadd.f32 %v507, %v760
  %762 = vmatmul.bf16.gmra.mxu0 %v609
  %v763 = vpop.f32.mrf.mxu0
  %v764 = vadd.f32 %v507, %v763
  %v765 = vpop.f32.mrf.mxu0
  %v766 = vadd.f32 %v507, %v765
  %767 = vmatmul.bf16.gmra.mxu0 %v612
  %v768 = vpop.f32.mrf.mxu0
  %v769 = vadd.f32 %v507, %v768
  %v770 = vpop.f32.mrf.mxu0
  %v771 = vadd.f32 %v507, %v770
  %772 = vmatmul.bf16.gmra.mxu0 %v615
  %v773 = vpop.f32.mrf.mxu0
  %v774 = vadd.f32 %v507, %v773
  %v775 = vpop.f32.mrf.mxu0
  %v776 = vadd.f32 %v507, %v775
  %777 = vmatmul.bf16.gmra.mxu0 %v618
  %v778 = vpop.f32.mrf.mxu0
  %v779 = vadd.f32 %v507, %v778
  %v780 = vpop.f32.mrf.mxu0
  %v781 = vadd.f32 %v507, %v780
  %782 = vmatmul.bf16.gmra.mxu0 %v621
  %v783 = vpop.f32.mrf.mxu0
  %v784 = vadd.f32 %v507, %v783
  %v785 = vpop.f32.mrf.mxu0
  %v786 = vadd.f32 %v507, %v785
  %787 = vmatmul.bf16.gmra.mxu0 %v624
  %v788 = vpop.f32.mrf.mxu0
  %v789 = vadd.f32 %v507, %v788
  %v790 = vpop.f32.mrf.mxu0
  %v791 = vadd.f32 %v507, %v790
  %792 = vmatmul.bf16.gmra.mxu0 %v627
  %v793 = vpop.f32.mrf.mxu0
  %v794 = vadd.f32 %v507, %v793
  %v795 = vpop.f32.mrf.mxu0
  %v796 = vadd.f32 %v507, %v795
  %797 = vdwg.mxu0
  %v798 = vmax.f32 %v639, 0.0
  %v799 = vmax.f32 %v641, 0.0
  %v800 = vmax.f32 %v644, 0.0
  %v801 = vmax.f32 %v646, 0.0
  %v802 = vmax.f32 %v649, 0.0
  %v803 = vmax.f32 %v651, 0.0
  %v804 = vmax.f32 %v654, 0.0
  %v805 = vmax.f32 %v656, 0.0
  %v806 = vmax.f32 %v659, 0.0
  %v807 = vmax.f32 %v661, 0.0
  %v808 = vmax.f32 %v664, 0.0
  %v809 = vmax.f32 %v666, 0.0
  %v810 = vmax.f32 %v669, 0.0
  %v811 = vmax.f32 %v671, 0.0
  %v812 = vmax.f32 %v674, 0.0
  %v813 = vmax.f32 %v676, 0.0
  %v814 = vmax.f32 %v679, 0.0
  %v815 = vmax.f32 %v681, 0.0
  %v816 = vmax.f32 %v684, 0.0
  %v817 = vmax.f32 %v686, 0.0
  %v818 = vmax.f32 %v689, 0.0
  %v819 = vmax.f32 %v691, 0.0
  %v820 = vmax.f32 %v694, 0.0
  %v821 = vmax.f32 %v696, 0.0
  %v822 = vmax.f32 %v699, 0.0
  %v823 = vmax.f32 %v701, 0.0
  %v824 = vmax.f32 %v704, 0.0
  %v825 = vmax.f32 %v706, 0.0
  %v826 = vmax.f32 %v709, 0.0
  %v827 = vmax.f32 %v711, 0.0
  %v828 = vmax.f32 %v714, 0.0
  %v829 = vmax.f32 %v716, 0.0
  %v830 = vmax.f32 %v719, 0.0
  %v831 = vmax.f32 %v721, 0.0
  %v832 = vmax.f32 %v724, 0.0
  %v833 = vmax.f32 %v726, 0.0
  %v834 = vmax.f32 %v729, 0.0
  %v835 = vmax.f32 %v731, 0.0
  %v836 = vmax.f32 %v734, 0.0
  %v837 = vmax.f32 %v736, 0.0
  %v838 = vmax.f32 %v739, 0.0
  %v839 = vmax.f32 %v741, 0.0
  %v840 = vmax.f32 %v744, 0.0
  %v841 = vmax.f32 %v746, 0.0
  %v842 = vmax.f32 %v749, 0.0
  %v843 = vmax.f32 %v751, 0.0
  %v844 = vmax.f32 %v754, 0.0
  %v845 = vmax.f32 %v756, 0.0
  %v846 = vmax.f32 %v759, 0.0
  %v847 = vmax.f32 %v761, 0.0
  %v848 = vmax.f32 %v764, 0.0
  %v849 = vmax.f32 %v766, 0.0
  %v850 = vmax.f32 %v769, 0.0
  %v851 = vmax.f32 %v771, 0.0
  %v852 = vmax.f32 %v774, 0.0
  %v853 = vmax.f32 %v776, 0.0
  %v854 = vmax.f32 %v779, 0.0
  %v855 = vmax.f32 %v781, 0.0
  %v856 = vmax.f32 %v784, 0.0
  %v857 = vmax.f32 %v786, 0.0
  %v858 = vmax.f32 %v789, 0.0
  %v859 = vmax.f32 %v791, 0.0
  %v860 = vmax.f32 %v794, 0.0
  %v861 = vmax.f32 %v796, 0.0
  %v862 = vpack.c.bf16 %v799, %v798
  %v863 = vpack.c.bf16 %v801, %v800
  %v864 = vpack.c.bf16 %v803, %v802
  %v865 = vpack.c.bf16 %v805, %v804
  %v866 = vpack.c.bf16 %v807, %v806
  %v867 = vpack.c.bf16 %v809, %v808
  %v868 = vpack.c.bf16 %v811, %v810
  %v869 = vpack.c.bf16 %v813, %v812
  %v870 = vpack.c.bf16 %v815, %v814
  %v871 = vpack.c.bf16 %v817, %v816
  %v872 = vpack.c.bf16 %v819, %v818
  %v873 = vpack.c.bf16 %v821, %v820
  %v874 = vpack.c.bf16 %v823, %v822
  %v875 = vpack.c.bf16 %v825, %v824
  %v876 = vpack.c.bf16 %v827, %v826
  %v877 = vpack.c.bf16 %v829, %v828
  %v878 = vpack.c.bf16 %v831, %v830
  %v879 = vpack.c.bf16 %v833, %v832
  %v880 = vpack.c.bf16 %v835, %v834
  %v881 = vpack.c.bf16 %v837, %v836
  %v882 = vpack.c.bf16 %v839, %v838
  %v883 = vpack.c.bf16 %v841, %v840
  %v884 = vpack.c.bf16 %v843, %v842
  %v885 = vpack.c.bf16 %v845, %v844
  %v886 = vpack.c.bf16 %v847, %v846
  %v887 = vpack.c.bf16 %v849, %v848
  %v888 = vpack.c.bf16 %v851, %v850
  %v889 = vpack.c.bf16 %v853, %v852
  %v890 = vpack.c.bf16 %v855, %v854
  %v891 = vpack.c.bf16 %v857, %v856
  %v892 = vpack.c.bf16 %v859, %v858
  %v893 = vpack.c.bf16 %v861, %v860
  %v894 = vld [vmem:[%s3] sm:$0xf]
  %v895 = vld [vmem:[%s3 + $0x4] sm:$0xf]
  %v896 = vld [vmem:[%s3 + $0x8] sm:$0xf]
  %v897 = vld [vmem:[%s3 + $0xc] sm:$0xf]
  %v898 = vperm.slane %v119, 0
  %v903 = vunpack.c.l.b16 %v894
  %v904 = vunpack.c.l.b16 %v895
  %v905 = vunpack.c.l.b16 %v896
  %v906 = vunpack.c.l.b16 %v897
  %v907 = vpack.c.b16 %v904, %v903
  %v908 = vpack.c.b16 %v906, %v905
  %v912 = vsel %vm137, %v862, 0
  %v915 = vsel %vm137, %v863, 0
  %v918 = vsel %vm137, %v864, 0
  %v921 = vsel %vm137, %v865, 0
  %v924 = vsel %vm137, %v866, 0
  %v927 = vsel %vm137, %v867, 0
  %v930 = vsel %vm137, %v868, 0
  %v933 = vsel %vm137, %v869, 0
  %v936 = vsel %vm137, %v870, 0
  %v939 = vsel %vm137, %v871, 0
  %v942 = vsel %vm137, %v872, 0
  %v945 = vsel %vm137, %v873, 0
  %v948 = vsel %vm137, %v874, 0
  %v951 = vsel %vm137, %v875, 0
  %v954 = vsel %vm137, %v876, 0
  %v957 = vsel %vm137, %v877, 0
  %v960 = vsel %vm137, %v878, 0
  %v963 = vsel %vm137, %v879, 0
  %v966 = vsel %vm137, %v880, 0
  %v969 = vsel %vm137, %v881, 0
  %v972 = vsel %vm137, %v882, 0
  %v975 = vsel %vm137, %v883, 0
  %v978 = vsel %vm137, %v884, 0
  %v981 = vsel %vm137, %v885, 0
  %v984 = vsel %vm137, %v886, 0
  %v987 = vsel %vm137, %v887, 0
  %v990 = vsel %vm137, %v888, 0
  %v993 = vsel %vm137, %v889, 0
  %v996 = vsel %vm137, %v890, 0
  %v999 = vsel %vm137, %v891, 0
  %v1002 = vsel %vm137, %v892, 0
  %v1005 = vsel %vm137, %v893, 0
  %1007 = vmatpush.bf16.msra.mxu0 0
  %1008 = vmatpush.bf16.msra.mxu0 0
  %1009 = vmatpush.bf16.msra.mxu0 0
  %1010 = vmatpush.bf16.msra.mxu0 0
  %1011 = vmatpush.bf16.msra.mxu0 0
  %1012 = vmatpush.bf16.msra.mxu0 0
  %1013 = vmatpush.bf16.msra.mxu0 %v908
  %1014 = vmatpush.bf16.msra.mxu0 %v907
  %1015 = vmatmul.bf16.gmra.mxu0 %v912
  %v1016 = vpop.f32.mrf.mxu0
  %v1017 = vadd.f32 %v898, %v1016
  %v1018 = vpop.f32.mrf.mxu0
  %v1019 = vadd.f32 %v898, %v1018
  %1020 = vmatmul.bf16.gmra.mxu0 %v915
  %v1021 = vpop.f32.mrf.mxu0
  %v1022 = vadd.f32 %v898, %v1021
  %v1023 = vpop.f32.mrf.mxu0
  %v1024 = vadd.f32 %v898, %v1023
  %1025 = vmatmul.bf16.gmra.mxu0 %v918
  %v1026 = vpop.f32.mrf.mxu0
  %v1027 = vadd.f32 %v898, %v1026
  %v1028 = vpop.f32.mrf.mxu0
  %v1029 = vadd.f32 %v898, %v1028
  %1030 = vmatmul.bf16.gmra.mxu0 %v921
  %v1031 = vpop.f32.mrf.mxu0
  %v1032 = vadd.f32 %v898, %v1031
  %v1033 = vpop.f32.mrf.mxu0
  %v1034 = vadd.f32 %v898, %v1033
  %1035 = vmatmul.bf16.gmra.mxu0 %v924
  %v1036 = vpop.f32.mrf.mxu0
  %v1037 = vadd.f32 %v898, %v1036
  %v1038 = vpop.f32.mrf.mxu0
  %v1039 = vadd.f32 %v898, %v1038
  %1040 = vmatmul.bf16.gmra.mxu0 %v927
  %v1041 = vpop.f32.mrf.mxu0
  %v1042 = vadd.f32 %v898, %v1041
  %v1043 = vpop.f32.mrf.mxu0
  %v1044 = vadd.f32 %v898, %v1043
  %1045 = vmatmul.bf16.gmra.mxu0 %v930
  %v1046 = vpop.f32.mrf.mxu0
  %v1047 = vadd.f32 %v898, %v1046
  %v1048 = vpop.f32.mrf.mxu0
  %v1049 = vadd.f32 %v898, %v1048
  %1050 = vmatmul.bf16.gmra.mxu0 %v933
  %v1051 = vpop.f32.mrf.mxu0
  %v1052 = vadd.f32 %v898, %v1051
  %v1053 = vpop.f32.mrf.mxu0
  %v1054 = vadd.f32 %v898, %v1053
  %1055 = vmatmul.bf16.gmra.mxu0 %v936
  %v1056 = vpop.f32.mrf.mxu0
  %v1057 = vadd.f32 %v898, %v1056
  %v1058 = vpop.f32.mrf.mxu0
  %v1059 = vadd.f32 %v898, %v1058
  %1060 = vmatmul.bf16.gmra.mxu0 %v939
  %v1061 = vpop.f32.mrf.mxu0
  %v1062 = vadd.f32 %v898, %v1061
  %v1063 = vpop.f32.mrf.mxu0
  %v1064 = vadd.f32 %v898, %v1063
  %1065 = vmatmul.bf16.gmra.mxu0 %v942
  %v1066 = vpop.f32.mrf.mxu0
  %v1067 = vadd.f32 %v898, %v1066
  %v1068 = vpop.f32.mrf.mxu0
  %v1069 = vadd.f32 %v898, %v1068
  %1070 = vmatmul.bf16.gmra.mxu0 %v945
  %v1071 = vpop.f32.mrf.mxu0
  %v1072 = vadd.f32 %v898, %v1071
  %v1073 = vpop.f32.mrf.mxu0
  %v1074 = vadd.f32 %v898, %v1073
  %1075 = vmatmul.bf16.gmra.mxu0 %v948
  %v1076 = vpop.f32.mrf.mxu0
  %v1077 = vadd.f32 %v898, %v1076
  %v1078 = vpop.f32.mrf.mxu0
  %v1079 = vadd.f32 %v898, %v1078
  %1080 = vmatmul.bf16.gmra.mxu0 %v951
  %v1081 = vpop.f32.mrf.mxu0
  %v1082 = vadd.f32 %v898, %v1081
  %v1083 = vpop.f32.mrf.mxu0
  %v1084 = vadd.f32 %v898, %v1083
  %1085 = vmatmul.bf16.gmra.mxu0 %v954
  %v1086 = vpop.f32.mrf.mxu0
  %v1087 = vadd.f32 %v898, %v1086
  %v1088 = vpop.f32.mrf.mxu0
  %v1089 = vadd.f32 %v898, %v1088
  %1090 = vmatmul.bf16.gmra.mxu0 %v957
  %v1091 = vpop.f32.mrf.mxu0
  %v1092 = vadd.f32 %v898, %v1091
  %v1093 = vpop.f32.mrf.mxu0
  %v1094 = vadd.f32 %v898, %v1093
  %1095 = vmatmul.bf16.gmra.mxu0 %v960
  %v1096 = vpop.f32.mrf.mxu0
  %v1097 = vadd.f32 %v898, %v1096
  %v1098 = vpop.f32.mrf.mxu0
  %v1099 = vadd.f32 %v898, %v1098
  %1100 = vmatmul.bf16.gmra.mxu0 %v963
  %v1101 = vpop.f32.mrf.mxu0
  %v1102 = vadd.f32 %v898, %v1101
  %v1103 = vpop.f32.mrf.mxu0
  %v1104 = vadd.f32 %v898, %v1103
  %1105 = vmatmul.bf16.gmra.mxu0 %v966
  %v1106 = vpop.f32.mrf.mxu0
  %v1107 = vadd.f32 %v898, %v1106
  %v1108 = vpop.f32.mrf.mxu0
  %v1109 = vadd.f32 %v898, %v1108
  %1110 = vmatmul.bf16.gmra.mxu0 %v969
  %v1111 = vpop.f32.mrf.mxu0
  %v1112 = vadd.f32 %v898, %v1111
  %v1113 = vpop.f32.mrf.mxu0
  %v1114 = vadd.f32 %v898, %v1113
  %1115 = vmatmul.bf16.gmra.mxu0 %v972
  %v1116 = vpop.f32.mrf.mxu0
  %v1117 = vadd.f32 %v898, %v1116
  %v1118 = vpop.f32.mrf.mxu0
  %v1119 = vadd.f32 %v898, %v1118
  %1120 = vmatmul.bf16.gmra.mxu0 %v975
  %v1121 = vpop.f32.mrf.mxu0
  %v1122 = vadd.f32 %v898, %v1121
  %v1123 = vpop.f32.mrf.mxu0
  %v1124 = vadd.f32 %v898, %v1123
  %1125 = vmatmul.bf16.gmra.mxu0 %v978
  %v1126 = vpop.f32.mrf.mxu0
  %v1127 = vadd.f32 %v898, %v1126
  %v1128 = vpop.f32.mrf.mxu0
  %v1129 = vadd.f32 %v898, %v1128
  %1130 = vmatmul.bf16.gmra.mxu0 %v981
  %v1131 = vpop.f32.mrf.mxu0
  %v1132 = vadd.f32 %v898, %v1131
  %v1133 = vpop.f32.mrf.mxu0
  %v1134 = vadd.f32 %v898, %v1133
  %1135 = vmatmul.bf16.gmra.mxu0 %v984
  %v1136 = vpop.f32.mrf.mxu0
  %v1137 = vadd.f32 %v898, %v1136
  %v1138 = vpop.f32.mrf.mxu0
  %v1139 = vadd.f32 %v898, %v1138
  %1140 = vmatmul.bf16.gmra.mxu0 %v987
  %v1141 = vpop.f32.mrf.mxu0
  %v1142 = vadd.f32 %v898, %v1141
  %v1143 = vpop.f32.mrf.mxu0
  %v1144 = vadd.f32 %v898, %v1143
  %1145 = vmatmul.bf16.gmra.mxu0 %v990
  %v1146 = vpop.f32.mrf.mxu0
  %v1147 = vadd.f32 %v898, %v1146
  %v1148 = vpop.f32.mrf.mxu0
  %v1149 = vadd.f32 %v898, %v1148
  %1150 = vmatmul.bf16.gmra.mxu0 %v993
  %v1151 = vpop.f32.mrf.mxu0
  %v1152 = vadd.f32 %v898, %v1151
  %v1153 = vpop.f32.mrf.mxu0
  %v1154 = vadd.f32 %v898, %v1153
  %1155 = vmatmul.bf16.gmra.mxu0 %v996
  %v1156 = vpop.f32.mrf.mxu0
  %v1157 = vadd.f32 %v898, %v1156
  %v1158 = vpop.f32.mrf.mxu0
  %v1159 = vadd.f32 %v898, %v1158
  %1160 = vmatmul.bf16.gmra.mxu0 %v999
  %v1161 = vpop.f32.mrf.mxu0
  %v1162 = vadd.f32 %v898, %v1161
  %v1163 = vpop.f32.mrf.mxu0
  %v1164 = vadd.f32 %v898, %v1163
  %1165 = vmatmul.bf16.gmra.mxu0 %v1002
  %v1166 = vpop.f32.mrf.mxu0
  %v1167 = vadd.f32 %v898, %v1166
  %v1168 = vpop.f32.mrf.mxu0
  %v1169 = vadd.f32 %v898, %v1168
  %1170 = vmatmul.bf16.gmra.mxu0 %v1005
  %v1171 = vpop.f32.mrf.mxu0
  %v1172 = vadd.f32 %v898, %v1171
  %v1173 = vpop.f32.mrf.mxu0
  %v1174 = vadd.f32 %v898, %v1173
  %1175 = vdwg.mxu0
  %vm1176 = vcmask 130048
  %1177 = vst.msk [vmem:[%s5] sm:$0xff] %vm1176, %v1017
  %1178 = vst.msk [vmem:[%s5 + $0x8] sm:$0xff] %vm1176, %v1019
  %1179 = vst.msk [vmem:[%s5 + $0x10] sm:$0xff] %vm1176, %v1022
  %1180 = vst.msk [vmem:[%s5 + $0x18] sm:$0xff] %vm1176, %v1024
  %1181 = vst.msk [vmem:[%s5 + $0x20] sm:$0xff] %vm1176, %v1027
  %1182 = vst.msk [vmem:[%s5 + $0x28] sm:$0xff] %vm1176, %v1029
  %1183 = vst.msk [vmem:[%s5 + $0x30] sm:$0xff] %vm1176, %v1032
  %1184 = vst.msk [vmem:[%s5 + $0x38] sm:$0xff] %vm1176, %v1034
  %1185 = vst.msk [vmem:[%s5 + $0x40] sm:$0xff] %vm1176, %v1037
  %1186 = vst.msk [vmem:[%s5 + $0x48] sm:$0xff] %vm1176, %v1039
  %1187 = vst.msk [vmem:[%s5 + $0x50] sm:$0xff] %vm1176, %v1042
  %1188 = vst.msk [vmem:[%s5 + $0x58] sm:$0xff] %vm1176, %v1044
  %1189 = vst.msk [vmem:[%s5 + $0x60] sm:$0xff] %vm1176, %v1047
  %1190 = vst.msk [vmem:[%s5 + $0x68] sm:$0xff] %vm1176, %v1049
  %1191 = vst.msk [vmem:[%s5 + $0x70] sm:$0xff] %vm1176, %v1052
  %1192 = vst.msk [vmem:[%s5 + $0x78] sm:$0xff] %vm1176, %v1054
  %1193 = vst.msk [vmem:[%s5 + $0x80] sm:$0xff] %vm1176, %v1057
  %1194 = vst.msk [vmem:[%s5 + $0x88] sm:$0xff] %vm1176, %v1059
  %1195 = vst.msk [vmem:[%s5 + $0x90] sm:$0xff] %vm1176, %v1062
  %1196 = vst.msk [vmem:[%s5 + $0x98] sm:$0xff] %vm1176, %v1064
  %1197 = vst.msk [vmem:[%s5 + $0xa0] sm:$0xff] %vm1176, %v1067
  %1198 = vst.msk [vmem:[%s5 + $0xa8] sm:$0xff] %vm1176, %v1069
  %1199 = vst.msk [vmem:[%s5 + $0xb0] sm:$0xff] %vm1176, %v1072
  %1200 = vst.msk [vmem:[%s5 + $0xb8] sm:$0xff] %vm1176, %v1074
  %1201 = vst.msk [vmem:[%s5 + $0xc0] sm:$0xff] %vm1176, %v1077
  %1202 = vst.msk [vmem:[%s5 + $0xc8] sm:$0xff] %vm1176, %v1079
  %1203 = vst.msk [vmem:[%s5 + $0xd0] sm:$0xff] %vm1176, %v1082
  %1204 = vst.msk [vmem:[%s5 + $0xd8] sm:$0xff] %vm1176, %v1084
  %1205 = vst.msk [vmem:[%s5 + $0xe0] sm:$0xff] %vm1176, %v1087
  %1206 = vst.msk [vmem:[%s5 + $0xe8] sm:$0xff] %vm1176, %v1089
  %1207 = vst.msk [vmem:[%s5 + $0xf0] sm:$0xff] %vm1176, %v1092
  %1208 = vst.msk [vmem:[%s5 + $0xf8] sm:$0xff] %vm1176, %v1094
  %1209 = vst.msk [vmem:[%s5 + $0x100] sm:$0xff] %vm1176, %v1097
  %1210 = vst.msk [vmem:[%s5 + $0x108] sm:$0xff] %vm1176, %v1099
  %1211 = vst.msk [vmem:[%s5 + $0x110] sm:$0xff] %vm1176, %v1102
  %1212 = vst.msk [vmem:[%s5 + $0x118] sm:$0xff] %vm1176, %v1104
  %1213 = vst.msk [vmem:[%s5 + $0x120] sm:$0xff] %vm1176, %v1107
  %1214 = vst.msk [vmem:[%s5 + $0x128] sm:$0xff] %vm1176, %v1109
  %1215 = vst.msk [vmem:[%s5 + $0x130] sm:$0xff] %vm1176, %v1112
  %1216 = vst.msk [vmem:[%s5 + $0x138] sm:$0xff] %vm1176, %v1114
  %1217 = vst.msk [vmem:[%s5 + $0x140] sm:$0xff] %vm1176, %v1117
  %1218 = vst.msk [vmem:[%s5 + $0x148] sm:$0xff] %vm1176, %v1119
  %1219 = vst.msk [vmem:[%s5 + $0x150] sm:$0xff] %vm1176, %v1122
  %1220 = vst.msk [vmem:[%s5 + $0x158] sm:$0xff] %vm1176, %v1124
  %1221 = vst.msk [vmem:[%s5 + $0x160] sm:$0xff] %vm1176, %v1127
  %1222 = vst.msk [vmem:[%s5 + $0x168] sm:$0xff] %vm1176, %v1129
  %1223 = vst.msk [vmem:[%s5 + $0x170] sm:$0xff] %vm1176, %v1132
  %1224 = vst.msk [vmem:[%s5 + $0x178] sm:$0xff] %vm1176, %v1134
  %1225 = vst.msk [vmem:[%s5 + $0x180] sm:$0xff] %vm1176, %v1137
  %1226 = vst.msk [vmem:[%s5 + $0x188] sm:$0xff] %vm1176, %v1139
  %1227 = vst.msk [vmem:[%s5 + $0x190] sm:$0xff] %vm1176, %v1142
  %1228 = vst.msk [vmem:[%s5 + $0x198] sm:$0xff] %vm1176, %v1144
  %1229 = vst.msk [vmem:[%s5 + $0x1a0] sm:$0xff] %vm1176, %v1147
  %1230 = vst.msk [vmem:[%s5 + $0x1a8] sm:$0xff] %vm1176, %v1149
  %1231 = vst.msk [vmem:[%s5 + $0x1b0] sm:$0xff] %vm1176, %v1152
  %1232 = vst.msk [vmem:[%s5 + $0x1b8] sm:$0xff] %vm1176, %v1154
  %1233 = vst.msk [vmem:[%s5 + $0x1c0] sm:$0xff] %vm1176, %v1157
  %1234 = vst.msk [vmem:[%s5 + $0x1c8] sm:$0xff] %vm1176, %v1159
  %1235 = vst.msk [vmem:[%s5 + $0x1d0] sm:$0xff] %vm1176, %v1162
  %1236 = vst.msk [vmem:[%s5 + $0x1d8] sm:$0xff] %vm1176, %v1164
  %1237 = vst.msk [vmem:[%s5 + $0x1e0] sm:$0xff] %vm1176, %v1167
  %1238 = vst.msk [vmem:[%s5 + $0x1e8] sm:$0xff] %vm1176, %v1169
  %1239 = vst.msk [vmem:[%s5 + $0x1f0] sm:$0xff] %vm1176, %v1172
  %1240 = vst.msk [vmem:[%s5 + $0x1f8] sm:$0xff] %vm1176, %v1174
  // Predicated region
  $region22: #{_mlp_forward_impl.1} parent=0 // pred_check
    _
  $region23: #{_mlp_forward_impl.1} parent=0 // pred_check_branch
    %1242 = sbr.rel (0) target = $region25
  $region24: #{_mlp_forward_impl.1} parent=0 // pred_region
    _
  $region25: #{_mlp_forward_impl.1} parent=0 // pred_fallthru
    _
  // Predicated region
  $region26: #{_mlp_forward_impl.1} parent=0 // pred_check
    _
  $region27: #{_mlp_forward_impl.1} parent=0 // pred_check_branch
    %1244 = sbr.rel (0) target = $region29
  $region28: #{_mlp_forward_impl.1} parent=0 // pred_region
    _
  $region29: #{_mlp_forward_impl.1} parent=0 // pred_fallthru
    _

</llo_original>
